<compile_context>
chip_gen: v5e
topology: v5e:2x2
jax: 0.10.0
libtpu: 0.0.40
codegen_flags: <defaults>
</compile_context>

<pallas_src>
import math

import jax
import jax.numpy as jnp
from jax.experimental import pallas as pl
from jax.experimental.pallas import tpu as pltpu

# ---------------- problem sizes (small, consistent with the module) ----------
N = 2           # batch
CIN = 16        # feature channels into the RPN head
CMID = 16       # RPN head hidden channels (torch RPNHead uses Cin -> Cin)
H = 16          # feature map height
W = 16          # feature map width
HW = H * W      # 256 positions (lane axis)
A = 3           # anchors per location (1 scale x 3 aspect ratios)
K = HW * A      # anchors per image = 768
STRIDE = 8      # image 128 / feature 16
BBOX_XFORM_CLIP = math.log(1000.0 / 16.0)
MIN_SIZE = 0.001
PRE_NMS_TOP_N = 2000    # test-time setting (>= K, so pre-NMS top-k is a no-op)
POST_NMS_TOP_N = 100    # test-time setting


# ---------------- fused kernel: conv head + 1x1 heads + decode + clip --------
def rpn_fused_kernel(sizes_ref, patches_ref, w9_ref, b3_ref, wcb_ref, bcb_ref,
                     anch_ref, cls_ref, box_ref):
    # patches_ref: (1, 9*CIN, HW) bf16  -- im2col'd feature map, one image
    # w9_ref:      (CMID, 9*CIN)  bf16  -- 3x3 conv weight, im2col layout
    # wcb_ref:     (5A, CMID)     bf16  -- fused [cls | dx | dy | dw | dh] head
    # anch_ref:    (4, A, HW)     f32   -- rows: anchor [w, h, cx, cy]
    n = pl.program_id(0)

    patches = patches_ref[0]                                     # (144, 256)
    # single im2col matmul on the MXU, f32 accumulation
    hidden = jnp.dot(w9_ref[...], patches,
                     preferred_element_type=jnp.float32)         # (16, 256)
    hidden = jnp.maximum(hidden + b3_ref[...], 0.0)              # bias + ReLU

    # fused objectness + bbox-delta 1x1 heads in one matmul
    heads = jnp.dot(wcb_ref[...], hidden.astype(jnp.bfloat16),
                    preferred_element_type=jnp.float32) + bcb_ref[...]  # (15,256)

    # objectness logits, (A, HW), lane-dense store
    cls_ref[0] = heads[0:A, :]

    # box deltas, coord-major rows: [dx_a | dy_a | dw_a | dh_a], each (A, HW)
    dx = heads[1 * A:2 * A, :]
    dy = heads[2 * A:3 * A, :]
    dw = jnp.minimum(heads[3 * A:4 * A, :], BBOX_XFORM_CLIP)
    dh = jnp.minimum(heads[4 * A:5 * A, :], BBOX_XFORM_CLIP)

    wa = anch_ref[0]                                             # (A, HW)
    ha = anch_ref[1]
    cxa = anch_ref[2]
    cya = anch_ref[3]

    pcx = dx * wa + cxa
    pcy = dy * ha + cya
    pw = jnp.exp(dw) * wa
    ph = jnp.exp(dh) * ha

    h_img = sizes_ref[n, 0].astype(jnp.float32)
    w_img = sizes_ref[n, 1].astype(jnp.float32)

    # clipped corners, each a lane-dense (A, HW) store
    box_ref[0, 0] = jnp.clip(pcx - 0.5 * pw, 0.0, w_img)         # x1
    box_ref[0, 1] = jnp.clip(pcy - 0.5 * ph, 0.0, h_img)         # y1
    box_ref[0, 2] = jnp.clip(pcx + 0.5 * pw, 0.0, w_img)         # x2
    box_ref[0, 3] = jnp.clip(pcy + 0.5 * ph, 0.0, h_img)         # y2


def rpn_fused(patches, w9, b3c, wcb, bcb, anch, image_sizes):
    grid_spec = pltpu.PrefetchScalarGridSpec(
        num_scalar_prefetch=1,                 # image_sizes -> SMEM
        grid=(N,),
        in_specs=[
            pl.BlockSpec((1, 9 * CIN, HW), lambda n, sz: (n, 0, 0)),
            pl.BlockSpec((CMID, 9 * CIN), lambda n, sz: (0, 0)),
            pl.BlockSpec((CMID, 1), lambda n, sz: (0, 0)),
            pl.BlockSpec((5 * A, CMID), lambda n, sz: (0, 0)),
            pl.BlockSpec((5 * A, 1), lambda n, sz: (0, 0)),
            pl.BlockSpec((4, A, HW), lambda n, sz: (0, 0, 0)),
        ],
        out_specs=[
            pl.BlockSpec((1, A, HW), lambda n, sz: (n, 0, 0)),
            pl.BlockSpec((1, 4, A, HW), lambda n, sz: (n, 0, 0, 0)),
        ],
    )
    cls_t, boxes_t = pl.pallas_call(
        rpn_fused_kernel,
        out_shape=(jax.ShapeDtypeStruct((N, A, HW), jnp.float32),
                   jax.ShapeDtypeStruct((N, 4, A, HW), jnp.float32)),
        grid_spec=grid_spec,
        # 'parallel' -> one image per TensorCore on v7x; on v5e/v6e this is a
        # short serial loop (per-step overhead ~0.35us, negligible here).
        compiler_params=pltpu.CompilerParams(
            dimension_semantics=("parallel",)),
    )(image_sizes, patches, w9, b3c, wcb, bcb, anch)
    return cls_t, boxes_t


# ---------------- glue: anchors, weight folding, proposal filtering ----------
def anchor_params(scales=(32.0,), ratios=(0.5, 1.0, 2.0)):
    """Precomputed anchor [w, h, cx, cy] constants in (4, A, HW) layout."""
    scales = jnp.asarray(scales, jnp.float32)
    ratios = jnp.asarray(ratios, jnp.float32)
    h_ratios = jnp.sqrt(ratios)
    w_ratios = 1.0 / h_ratios
    ws = (w_ratios[:, None] * scales[None, :]).reshape(-1)       # (A,)
    hs = (h_ratios[:, None] * scales[None, :]).reshape(-1)
    # torchvision AnchorGenerator rounds the base-anchor corners
    x1b = jnp.round(-ws / 2.0)
    y1b = jnp.round(-hs / 2.0)
    x2b = jnp.round(ws / 2.0)
    y2b = jnp.round(hs / 2.0)
    wa0 = x2b - x1b
    ha0 = y2b - y1b
    cx0 = 0.5 * (x1b + x2b)
    cy0 = 0.5 * (y1b + y2b)
    sx = jnp.arange(W, dtype=jnp.float32) * STRIDE
    sy = jnp.arange(H, dtype=jnp.float32) * STRIDE
    syg, sxg = jnp.meshgrid(sy, sx, indexing="ij")               # (H, W)
    cxg = sxg.reshape(-1)                                        # (HW,), hw = h*W + w
    cyg = syg.reshape(-1)
    wa = jnp.broadcast_to(wa0[:, None], (A, HW))
    ha = jnp.broadcast_to(ha0[:, None], (A, HW))
    cx = cx0[:, None] + cxg[None, :]
    cy = cy0[:, None] + cyg[None, :]
    return jnp.stack([wa, ha, cx, cy], axis=0)                   # (4, A, HW)


def filter_proposals(boxes, scores):
    # boxes: (N, 4, K) already clipped; scores: (N, K) objectness logits.
    # PRE_NMS_TOP_N (2000) >= K (768) -> the pre-NMS top-k keeps everything,
    # so it is dropped entirely (saves a full sort + gather).
    bw = boxes[:, 2] - boxes[:, 0]
    bh = boxes[:, 3] - boxes[:, 1]
    valid = (bw >= MIN_SIZE) & (bh >= MIN_SIZE)                  # remove_small_boxes
    masked = jnp.where(valid, scores, -jnp.inf)
    # TODO(synk): batched_nms skipped (no static-shape Pallas equivalent);
    # keep the post_nms_top_n highest-scoring proposals instead.
    post = min(POST_NMS_TOP_N, K)
    final_scores, sel = jax.lax.top_k(masked, post)              # (N, post)
    final_boxes = jnp.take_along_axis(boxes, sel[:, None, :], axis=2)  # (N,4,post)
    final_boxes = jnp.transpose(final_boxes, (0, 2, 1))          # (N, post, 4)
    return final_boxes, final_scores


def rpn_forward(features_nchw, image_sizes, params):
    w3, b3, wc, bc, wb, bb = params     # PyTorch layouts (OIHW / (Cout, Cin))

    # --- wrapper-side layout prep (tiny XLA ops, all compile-time shapes) ---
    # im2col in transposed (channels-on-sublane, positions-on-lane) layout.
    xpad = jnp.pad(features_nchw, ((0, 0), (0, 0), (1, 1), (1, 1)))
    cols = [xpad[:, :, dy:dy + H, dx:dx + W]
            for dy in range(3) for dx in range(3)]               # 9 x (N,CIN,H,W)
    patches = jnp.concatenate(cols, axis=1).reshape(
        N, 9 * CIN, HW).astype(jnp.bfloat16)                     # (N, 144, 256)

    # 3x3 conv weight (CMID, CIN, 3, 3) -> (CMID, 9*CIN) matching patch order
    w9 = jnp.transpose(w3, (0, 2, 3, 1)).reshape(
        CMID, 9 * CIN).astype(jnp.bfloat16)
    b3c = b3.reshape(CMID, 1).astype(jnp.float32)

    # fused 1x1 heads: rows = [cls_a] ++ coord-major box rows [dx_a,dy_a,dw_a,dh_a]
    # (PyTorch box-conv out channels are anchor-major: channel = a*4 + coord)
    wb_cm = wb.reshape(A, 4, CMID).transpose(1, 0, 2).reshape(4 * A, CMID)
    bb_cm = bb.reshape(A, 4).transpose(1, 0).reshape(4 * A)
    wcb = jnp.concatenate([wc, wb_cm], axis=0).astype(jnp.bfloat16)   # (15, 16)
    bcb = jnp.concatenate([bc, bb_cm], axis=0).reshape(
        5 * A, 1).astype(jnp.float32)

    anch = anchor_params()                                       # (4, A, HW)

    cls_t, boxes_t = rpn_fused(patches, w9, b3c, wcb, bcb, anch, image_sizes)

    # flatten with anchor-major index k = a*HW + hw (consistent for both)
    scores = cls_t.reshape(N, K)                                 # (N, K)
    boxes = boxes_t.reshape(N, 4, K)                             # (N, 4, K)
    return filter_proposals(boxes, scores)


if __name__ == "__main__":
    key = jax.random.PRNGKey(0)
    k1, k2, k3, k4 = jax.random.split(key, 4)
    # Deterministic synthetic parameters in PyTorch conv layouts.
    w3 = 0.01 * jax.random.normal(k1, (CMID, CIN, 3, 3), jnp.float32)  # OIHW
    b3 = jnp.zeros((CMID,), jnp.float32)
    wc = 0.01 * jax.random.normal(k2, (A, CMID), jnp.float32)          # cls 1x1
    bc = jnp.zeros((A,), jnp.float32)
    wb = 0.01 * jax.random.normal(k3, (4 * A, CMID), jnp.float32)      # box 1x1
    bb = jnp.zeros((4 * A,), jnp.float32)
    params = (w3, b3, wc, bc, wb, bb)

    # Example inputs (features in PyTorch NCHW; image_sizes as (h, w) per image).
    features = jax.random.normal(k4, (N, CIN, H, W), jnp.float32)
    image_sizes = jnp.array([[120, 128], [128, 112]], dtype=jnp.int32)

    rpn_jit = jax.jit(rpn_forward)
    boxes, scores = rpn_jit(features, image_sizes, params)
    jax.block_until_ready((boxes, scores))
    assert boxes.shape == (N, POST_NMS_TOP_N, 4)
    assert scores.shape == (N, POST_NMS_TOP_N)
    print("KERNEL_OK")
</pallas_src>

<mosaic_0001>
module attributes {stable_mosaic.version = 11 : i64} {
  func.func @rpn_fused_kernel(%arg0: i32, %arg1: memref<2x2xi32, #tpu.memory_space<smem>>, %arg2: memref<1x144x256xbf16, #tpu.memory_space<vmem>>, %arg3: memref<16x144xbf16, #tpu.memory_space<vmem>>, %arg4: memref<16x1xf32, #tpu.memory_space<vmem>>, %arg5: memref<15x16xbf16, #tpu.memory_space<vmem>>, %arg6: memref<15x1xf32, #tpu.memory_space<vmem>>, %arg7: memref<4x3x256xf32, #tpu.memory_space<vmem>>, %arg8: memref<1x3x256xf32, #tpu.memory_space<vmem>>, %arg9: memref<1x4x3x256xf32, #tpu.memory_space<vmem>>) attributes {dimension_semantics = [#tpu.dimension_semantics<parallel>], iteration_bounds = array<i64: 2>, scalar_prefetch = 1 : i64, scratch_operands = 0 : i64, tpu.core_type = #tpu.core_type<tc>, window_params = [{transform_indices = @transform_0, window_bounds = array<i64: 1, 144, 256>}, {pipeline_mode = #tpu.pipeline_mode<synchronous>, transform_indices = @transform_1, window_bounds = array<i64: 16, 144>}, {pipeline_mode = #tpu.pipeline_mode<synchronous>, transform_indices = @transform_2, window_bounds = array<i64: 16, 1>}, {pipeline_mode = #tpu.pipeline_mode<synchronous>, transform_indices = @transform_3, window_bounds = array<i64: 15, 16>}, {pipeline_mode = #tpu.pipeline_mode<synchronous>, transform_indices = @transform_4, window_bounds = array<i64: 15, 1>}, {pipeline_mode = #tpu.pipeline_mode<synchronous>, transform_indices = @transform_5, window_bounds = array<i64: 4, 3, 256>}, {transform_indices = @transform_6, window_bounds = array<i64: 1, 3, 256>}, {transform_indices = @transform_7, window_bounds = array<i64: 1, 4, 3, 256>}]} {
    %c0 = arith.constant 0 : index
    %c0_0 = arith.constant 0 : index
    %c0_1 = arith.constant 0 : index
    %0 = vector.load %arg2[%c0, %c0_0, %c0_1] : memref<1x144x256xbf16, #tpu.memory_space<vmem>>, vector<1x144x256xbf16>
    %1 = vector.shape_cast %0 : vector<1x144x256xbf16> to vector<144x256xbf16>
    %c0_2 = arith.constant 0 : index
    %c0_3 = arith.constant 0 : index
    %2 = vector.load %arg3[%c0_2, %c0_3] : memref<16x144xbf16, #tpu.memory_space<vmem>>, vector<16x144xbf16>
    %cst = arith.constant dense<0.000000e+00> : vector<16x256xf32>
    %3 = tpu.matmul %2, %1, %cst {dimension_numbers = #tpu.dot_dimension_numbers<[1], [0], [0], [1], [0, 0, 1, 1], [], []>} : vector<16x144xbf16>, vector<144x256xbf16>, vector<16x256xf32> -> vector<16x256xf32>
    %c0_4 = arith.constant 0 : index
    %c0_5 = arith.constant 0 : index
    %4 = vector.load %arg4[%c0_4, %c0_5] : memref<16x1xf32, #tpu.memory_space<vmem>>, vector<16x1xf32>
    %5 = vector.broadcast %4 : vector<16x1xf32> to vector<16x256xf32>
    %6 = arith.addf %3, %5 : vector<16x256xf32>
    %cst_6 = arith.constant 0.000000e+00 : f32
    %7 = vector.broadcast %cst_6 : f32 to vector<16x256xf32>
    %8 = arith.maximumf %6, %7 : vector<16x256xf32>
    %c0_7 = arith.constant 0 : index
    %c0_8 = arith.constant 0 : index
    %9 = vector.load %arg5[%c0_7, %c0_8] : memref<15x16xbf16, #tpu.memory_space<vmem>>, vector<15x16xbf16>
    %10 = arith.truncf %8 : vector<16x256xf32> to vector<16x256xbf16>
    %cst_9 = arith.constant dense<0.000000e+00> : vector<15x256xf32>
    %11 = tpu.matmul %9, %10, %cst_9 {dimension_numbers = #tpu.dot_dimension_numbers<[1], [0], [0], [1], [0, 0, 1, 1], [], []>} : vector<15x16xbf16>, vector<16x256xbf16>, vector<15x256xf32> -> vector<15x256xf32>
    %c0_10 = arith.constant 0 : index
    %c0_11 = arith.constant 0 : index
    %12 = vector.load %arg6[%c0_10, %c0_11] : memref<15x1xf32, #tpu.memory_space<vmem>>, vector<15x1xf32>
    %13 = vector.broadcast %12 : vector<15x1xf32> to vector<15x256xf32>
    %14 = arith.addf %11, %13 : vector<15x256xf32>
    %15 = vector.extract_strided_slice %14 {offsets = [0, 0], sizes = [3, 256], strides = [1, 1]} : vector<15x256xf32> to vector<3x256xf32>
    %c0_12 = arith.constant 0 : index
    %c0_13 = arith.constant 0 : index
    %c0_14 = arith.constant 0 : index
    %16 = vector.load %arg8[%c0_12, %c0_13, %c0_14] : memref<1x3x256xf32, #tpu.memory_space<vmem>>, vector<1x3x256xf32>
    %17 = vector.shape_cast %16 : vector<1x3x256xf32> to vector<3x256xf32>
    %18 = vector.shape_cast %15 : vector<3x256xf32> to vector<1x3x256xf32>
    tpu.vector_store %arg8[%c0_12, %c0_13, %c0_14], %18 {strides = array<i32>} : memref<1x3x256xf32, #tpu.memory_space<vmem>>, vector<1x3x256xf32>,
    %19 = vector.extract_strided_slice %14 {offsets = [3, 0], sizes = [3, 256], strides = [1, 1]} : vector<15x256xf32> to vector<3x256xf32>
    %20 = vector.extract_strided_slice %14 {offsets = [6, 0], sizes = [3, 256], strides = [1, 1]} : vector<15x256xf32> to vector<3x256xf32>
    %21 = vector.extract_strided_slice %14 {offsets = [9, 0], sizes = [3, 256], strides = [1, 1]} : vector<15x256xf32> to vector<3x256xf32>
    %cst_15 = arith.constant 4.13516665 : f32
    %22 = vector.broadcast %cst_15 : f32 to vector<3x256xf32>
    %23 = arith.minimumf %21, %22 : vector<3x256xf32>
    %24 = vector.extract_strided_slice %14 {offsets = [12, 0], sizes = [3, 256], strides = [1, 1]} : vector<15x256xf32> to vector<3x256xf32>
    %cst_16 = arith.constant 4.13516665 : f32
    %25 = vector.broadcast %cst_16 : f32 to vector<3x256xf32>
    %26 = arith.minimumf %24, %25 : vector<3x256xf32>
    %c0_17 = arith.constant 0 : index
    %c0_18 = arith.constant 0 : index
    %c0_19 = arith.constant 0 : index
    %27 = vector.load %arg7[%c0_17, %c0_18, %c0_19] : memref<4x3x256xf32, #tpu.memory_space<vmem>>, vector<1x3x256xf32>
    %28 = vector.shape_cast %27 : vector<1x3x256xf32> to vector<3x256xf32>
    %c1 = arith.constant 1 : index
    %c0_20 = arith.constant 0 : index
    %c0_21 = arith.constant 0 : index
    %29 = vector.load %arg7[%c1, %c0_20, %c0_21] : memref<4x3x256xf32, #tpu.memory_space<vmem>>, vector<1x3x256xf32>
    %30 = vector.shape_cast %29 : vector<1x3x256xf32> to vector<3x256xf32>
    %c2 = arith.constant 2 : index
    %c0_22 = arith.constant 0 : index
    %c0_23 = arith.constant 0 : index
    %31 = vector.load %arg7[%c2, %c0_22, %c0_23] : memref<4x3x256xf32, #tpu.memory_space<vmem>>, vector<1x3x256xf32>
    %32 = vector.shape_cast %31 : vector<1x3x256xf32> to vector<3x256xf32>
    %c3 = arith.constant 3 : index
    %c0_24 = arith.constant 0 : index
    %c0_25 = arith.constant 0 : index
    %33 = vector.load %arg7[%c3, %c0_24, %c0_25] : memref<4x3x256xf32, #tpu.memory_space<vmem>>, vector<1x3x256xf32>
    %34 = vector.shape_cast %33 : vector<1x3x256xf32> to vector<3x256xf32>
    %35 = arith.mulf %19, %28 : vector<3x256xf32>
    %36 = arith.addf %35, %32 : vector<3x256xf32>
    %37 = arith.mulf %20, %30 : vector<3x256xf32>
    %38 = arith.addf %37, %34 : vector<3x256xf32>
    %39 = math.exp %23 : vector<3x256xf32>
    %40 = arith.mulf %39, %28 : vector<3x256xf32>
    %41 = math.exp %26 : vector<3x256xf32>
    %42 = arith.mulf %41, %30 : vector<3x256xf32>
    %43 = arith.index_cast %arg0 : i32 to index
    %c0_26 = arith.constant 0 : index
    %44 = memref.load %arg1[%43, %c0_26] : memref<2x2xi32, #tpu.memory_space<smem>>
    %45 = arith.sitofp %44 : i32 to f32
    %46 = arith.index_cast %arg0 : i32 to index
    %c1_27 = arith.constant 1 : index
    %47 = memref.load %arg1[%46, %c1_27] : memref<2x2xi32, #tpu.memory_space<smem>>
    %48 = arith.sitofp %47 : i32 to f32
    %cst_28 = arith.constant 5.000000e-01 : f32
    %49 = vector.broadcast %cst_28 : f32 to vector<3x256xf32>
    %50 = arith.mulf %49, %40 : vector<3x256xf32>
    %51 = arith.subf %36, %50 : vector<3x256xf32>
    %cst_29 = arith.constant 0.000000e+00 : f32
    %52 = vector.broadcast %cst_29 : f32 to vector<3x256xf32>
    %53 = arith.maximumf %52, %51 : vector<3x256xf32>
    %54 = vector.broadcast %48 : f32 to vector<3x256xf32>
    %55 = arith.minimumf %54, %53 : vector<3x256xf32>
    %c0_30 = arith.constant 0 : index
    %c0_31 = arith.constant 0 : index
    %c0_32 = arith.constant 0 : index
    %c0_33 = arith.constant 0 : index
    %56 = vector.load %arg9[%c0_30, %c0_31, %c0_32, %c0_33] : memref<1x4x3x256xf32, #tpu.memory_space<vmem>>, vector<1x1x3x256xf32>
    %57 = vector.shape_cast %56 : vector<1x1x3x256xf32> to vector<3x256xf32>
    %58 = vector.shape_cast %55 : vector<3x256xf32> to vector<1x1x3x256xf32>
    tpu.vector_store %arg9[%c0_30, %c0_31, %c0_32, %c0_33], %58 {strides = array<i32>} : memref<1x4x3x256xf32, #tpu.memory_space<vmem>>, vector<1x1x3x256xf32>,
    %cst_34 = arith.constant 5.000000e-01 : f32
    %59 = vector.broadcast %cst_34 : f32 to vector<3x256xf32>
    %60 = arith.mulf %59, %42 : vector<3x256xf32>
    %61 = arith.subf %38, %60 : vector<3x256xf32>
    %cst_35 = arith.constant 0.000000e+00 : f32
    %62 = vector.broadcast %cst_35 : f32 to vector<3x256xf32>
    %63 = arith.maximumf %62, %61 : vector<3x256xf32>
    %64 = vector.broadcast %45 : f32 to vector<3x256xf32>
    %65 = arith.minimumf %64, %63 : vector<3x256xf32>
    %c0_36 = arith.constant 0 : index
    %c1_37 = arith.constant 1 : index
    %c0_38 = arith.constant 0 : index
    %c0_39 = arith.constant 0 : index
    %66 = vector.load %arg9[%c0_36, %c1_37, %c0_38, %c0_39] : memref<1x4x3x256xf32, #tpu.memory_space<vmem>>, vector<1x1x3x256xf32>
    %67 = vector.shape_cast %66 : vector<1x1x3x256xf32> to vector<3x256xf32>
    %68 = vector.shape_cast %65 : vector<3x256xf32> to vector<1x1x3x256xf32>
    tpu.vector_store %arg9[%c0_36, %c1_37, %c0_38, %c0_39], %68 {strides = array<i32>} : memref<1x4x3x256xf32, #tpu.memory_space<vmem>>, vector<1x1x3x256xf32>,
    %cst_40 = arith.constant 5.000000e-01 : f32
    %69 = vector.broadcast %cst_40 : f32 to vector<3x256xf32>
    %70 = arith.mulf %69, %40 : vector<3x256xf32>
    %71 = arith.addf %36, %70 : vector<3x256xf32>
    %cst_41 = arith.constant 0.000000e+00 : f32
    %72 = vector.broadcast %cst_41 : f32 to vector<3x256xf32>
    %73 = arith.maximumf %72, %71 : vector<3x256xf32>
    %74 = vector.broadcast %48 : f32 to vector<3x256xf32>
    %75 = arith.minimumf %74, %73 : vector<3x256xf32>
    %c0_42 = arith.constant 0 : index
    %c2_43 = arith.constant 2 : index
    %c0_44 = arith.constant 0 : index
    %c0_45 = arith.constant 0 : index
    %76 = vector.load %arg9[%c0_42, %c2_43, %c0_44, %c0_45] : memref<1x4x3x256xf32, #tpu.memory_space<vmem>>, vector<1x1x3x256xf32>
    %77 = vector.shape_cast %76 : vector<1x1x3x256xf32> to vector<3x256xf32>
    %78 = vector.shape_cast %75 : vector<3x256xf32> to vector<1x1x3x256xf32>
    tpu.vector_store %arg9[%c0_42, %c2_43, %c0_44, %c0_45], %78 {strides = array<i32>} : memref<1x4x3x256xf32, #tpu.memory_space<vmem>>, vector<1x1x3x256xf32>,
    %cst_46 = arith.constant 5.000000e-01 : f32
    %79 = vector.broadcast %cst_46 : f32 to vector<3x256xf32>
    %80 = arith.mulf %79, %42 : vector<3x256xf32>
    %81 = arith.addf %38, %80 : vector<3x256xf32>
    %cst_47 = arith.constant 0.000000e+00 : f32
    %82 = vector.broadcast %cst_47 : f32 to vector<3x256xf32>
    %83 = arith.maximumf %82, %81 : vector<3x256xf32>
    %84 = vector.broadcast %45 : f32 to vector<3x256xf32>
    %85 = arith.minimumf %84, %83 : vector<3x256xf32>
    %c0_48 = arith.constant 0 : index
    %c3_49 = arith.constant 3 : index
    %c0_50 = arith.constant 0 : index
    %c0_51 = arith.constant 0 : index
    %86 = vector.load %arg9[%c0_48, %c3_49, %c0_50, %c0_51] : memref<1x4x3x256xf32, #tpu.memory_space<vmem>>, vector<1x1x3x256xf32>
    %87 = vector.shape_cast %86 : vector<1x1x3x256xf32> to vector<3x256xf32>
    %88 = vector.shape_cast %85 : vector<3x256xf32> to vector<1x1x3x256xf32>
    tpu.vector_store %arg9[%c0_48, %c3_49, %c0_50, %c0_51], %88 {strides = array<i32>} : memref<1x4x3x256xf32, #tpu.memory_space<vmem>>, vector<1x1x3x256xf32>,
    return
  }
  func.func @transform_0(%arg0: i32, %arg1: memref<2x2xi32, #tpu.memory_space<smem>>) -> (i32, i32, i32) {
    %c0_i32 = arith.constant 0 : i32
    %c0_i32_0 = arith.constant 0 : i32
    %c0_i32_1 = arith.constant 0 : i32
    return %arg0, %c0_i32, %c0_i32_0 : i32, i32, i32
  }
  func.func @transform_1(%arg0: i32, %arg1: memref<2x2xi32, #tpu.memory_space<smem>>) -> (i32, i32) {
    %c0_i32 = arith.constant 0 : i32
    %c0_i32_0 = arith.constant 0 : i32
    %c0_i32_1 = arith.constant 0 : i32
    return %c0_i32, %c0_i32_0 : i32, i32
  }
  func.func @transform_2(%arg0: i32, %arg1: memref<2x2xi32, #tpu.memory_space<smem>>) -> (i32, i32) {
    %c0_i32 = arith.constant 0 : i32
    %c0_i32_0 = arith.constant 0 : i32
    %c0_i32_1 = arith.constant 0 : i32
    return %c0_i32, %c0_i32_0 : i32, i32
  }
  func.func @transform_3(%arg0: i32, %arg1: memref<2x2xi32, #tpu.memory_space<smem>>) -> (i32, i32) {
    %c0_i32 = arith.constant 0 : i32
    %c0_i32_0 = arith.constant 0 : i32
    %c0_i32_1 = arith.constant 0 : i32
    return %c0_i32, %c0_i32_0 : i32, i32
  }
  func.func @transform_4(%arg0: i32, %arg1: memref<2x2xi32, #tpu.memory_space<smem>>) -> (i32, i32) {
    %c0_i32 = arith.constant 0 : i32
    %c0_i32_0 = arith.constant 0 : i32
    %c0_i32_1 = arith.constant 0 : i32
    return %c0_i32, %c0_i32_0 : i32, i32
  }
  func.func @transform_5(%arg0: i32, %arg1: memref<2x2xi32, #tpu.memory_space<smem>>) -> (i32, i32, i32) {
    %c0_i32 = arith.constant 0 : i32
    %c0_i32_0 = arith.constant 0 : i32
    %c0_i32_1 = arith.constant 0 : i32
    %c0_i32_2 = arith.constant 0 : i32
    return %c0_i32, %c0_i32_0, %c0_i32_1 : i32, i32, i32
  }
  func.func @transform_6(%arg0: i32, %arg1: memref<2x2xi32, #tpu.memory_space<smem>>) -> (i32, i32, i32) {
    %c0_i32 = arith.constant 0 : i32
    %c0_i32_0 = arith.constant 0 : i32
    %c0_i32_1 = arith.constant 0 : i32
    return %arg0, %c0_i32, %c0_i32_0 : i32, i32, i32
  }
  func.func @transform_7(%arg0: i32, %arg1: memref<2x2xi32, #tpu.memory_space<smem>>) -> (i32, i32, i32, i32) {
    %c0_i32 = arith.constant 0 : i32
    %c0_i32_0 = arith.constant 0 : i32
    %c0_i32_1 = arith.constant 0 : i32
    %c0_i32_2 = arith.constant 0 : i32
    return %arg0, %c0_i32, %c0_i32_0, %c0_i32_1 : i32, i32, i32, i32
  }
}

</mosaic_0001>

<llo_original>
// kernel: rpn_forward.1
$region0: #{rpn_forward.1}
  #allocation0 [shape = 'u32[]', space=smem, size = 0x4, offset = 0x4, fixed_abs, tag = 'smem constant byte address 0x4 - core index']
  #allocation1 [shape = 'u32[72,128]{1,0:T(1,128)}', space=vmem, size = 0x9000, scoped, tag = 'internal scratch']
  #allocation2 [shape = 's32[1]{0}', space=sflag, size = 0x4, scoped, tag = 'scoped memory for rpn_forward.1']
  #allocation3 [shape = 'u8[1024]{0}', space=smem, size = 0x400, scoped, tag = 'prefetched SMEM operand 0']
  %s0 = inlined_call_operand.vmem [shape: s32[2,2], index: 0, kind: input, shape index: {}]
  %s1 = inlined_call_operand.vmem [shape: bf16[2,144,256], index: 1, kind: input, shape index: {}]
  %s2 = inlined_call_operand.vmem [shape: bf16[16,144], index: 2, kind: input, shape index: {}]
  %s3 = inlined_call_operand.vmem [shape: f32[16,1], index: 3, kind: input, shape index: {}]
  %s4 = inlined_call_operand.vmem [shape: bf16[15,16], index: 4, kind: input, shape index: {}]
  %s5 = inlined_call_operand.vmem [shape: f32[15,1], index: 5, kind: input, shape index: {}]
  %s6 = inlined_call_operand.vmem [shape: f32[4,3,256], index: 6, kind: input, shape index: {}]
  %s7 = inlined_call_operand.vmem [shape: f32[2,3,256], index: 7, kind: output, shape index: {0}]
  %s8 = inlined_call_operand.vmem [shape: f32[2,4,3,256], index: 8, kind: output, shape index: {1}]
  %9 = xla_tuple %s7, %s8
  %s10 = sld [smem:[#allocation0]]
  $region65: #{rpn_forward.1} parent=0
    _
  %s12 = ssub.s32 1, %s10
  %s13 = scalar_select 0, %s12, %s10
  %s15 = sshll.u32 %s0, 4
  %s16 = int_to_ptr.vmem [resolvable:$true] %s15
  %18 = dma.vmem_to_smem %s16, 32, [#allocation3], [#allocation2]
  %20 = dma.done [#allocation2], 32
  %21 = sfence
  loop: start=0, step=1, limit=4
  $region2: #{rpn_forward.1} parent=0 // loop_pre_header
    _
  $region3: #{rpn_forward.1} parent=0 // loop_header
    %s23 = sphi 0, %s27
    %p24 = scmp.ge.s32.totalorder %s23, 4
    %s33 = sphi 0, %s35
    %s36 = sphi 0, %s33
    %s37 = sphi 0, %s36
    %s53 = sphi 0, %s37
    %s57 = sphi 0, %s57
    %s59 = sphi 0, %s57
    %s60 = sphi 0, %s59
    %s74 = sphi 0, %s60
    %s78 = sphi 0, %s78
    %s80 = sphi 0, %s78
    %s81 = sphi 0, %s80
    %s95 = sphi 0, %s81
    %s99 = sphi 0, %s99
    %s101 = sphi 0, %s99
    %s102 = sphi 0, %s101
    %s116 = sphi 0, %s102
    %s120 = sphi 0, %s120
    %s122 = sphi 0, %s120
    %s123 = sphi 0, %s122
    %s137 = sphi 0, %s123
    %s141 = sphi 0, %s141
    %s143 = sphi 0, %s141
    %s144 = sphi 0, %s143
    %s158 = sphi 0, %s144
    %s164 = sphi 0, %s166
    %s167 = sphi 0, %s164
    %s168 = sphi 0, %s167
    %s184 = sphi 0, %s168
    %s190 = sphi 0, %s192
    %s193 = sphi 0, %s190
    %s194 = sphi 0, %s193
    %s210 = sphi 0, %s194
  $region4: #{rpn_forward.1} parent=0 // loop_header_branch
    %26 = sbr.rel (%p24) target = $region8
  $region5: #{rpn_forward.1} parent=0 // loop_body
    %s28 = ssub.s32 %s23, 1
    %s29 = ssub.s32 %s23, 2
    %s30 = sadd.s32 %s23, 1
    %s31 = ssub.s32 %s23, %s30
    %p32 = scmp.eq.s32.totalorder %s31, 0
    %s34 = sadd.s32 %s33, 1
    %s35 = scalar_select %p32, %s33, %s34
    %p38 = pneg %p32
    %p39 = scmp.eq.s32.totalorder %s23, 1
    %p40 = por %p38, %p39
    %p41 = scmp.ne.s32.totalorder %s33, %s36
    %p42 = scmp.eq.s32.totalorder %s23, 0
    %p43 = por %p41, %p42
    %p44 = scmp.ne.s32.totalorder %s33, %s36
    %p45 = scmp.eq.s32.totalorder %s28, 1
    %p46 = por %p44, %p45
    %p47 = scmp.ne.s32.totalorder %s36, %s37
    %p48 = scmp.eq.s32.totalorder %s28, 0
    %p49 = por %p47, %p48
    %p50 = scmp.ne.s32.totalorder %s36, %s37
    %p51 = scmp.eq.s32.totalorder %s29, 1
    %p52 = por %p50, %p51
    %p54 = scmp.ne.s32.totalorder %s37, %s53
    %p55 = scmp.eq.s32.totalorder %s29, 0
    %p56 = por %p54, %p55
    %s58 = sadd.s32 %s57, 1
    %p61 = scmp.eq.s32.totalorder %s23, 1
    %p62 = scmp.ne.s32.totalorder %s57, %s59
    %p63 = scmp.eq.s32.totalorder %s23, 0
    %p64 = por %p62, %p63
    %p65 = scmp.ne.s32.totalorder %s57, %s59
    %p66 = scmp.eq.s32.totalorder %s28, 1
    %p67 = por %p65, %p66
    %p68 = scmp.ne.s32.totalorder %s59, %s60
    %p69 = scmp.eq.s32.totalorder %s28, 0
    %p70 = por %p68, %p69
    %p71 = scmp.ne.s32.totalorder %s59, %s60
    %p72 = scmp.eq.s32.totalorder %s29, 1
    %p73 = por %p71, %p72
    %p75 = scmp.ne.s32.totalorder %s60, %s74
    %p76 = scmp.eq.s32.totalorder %s29, 0
    %p77 = por %p75, %p76
    %s79 = sadd.s32 %s78, 1
    %p82 = scmp.eq.s32.totalorder %s23, 1
    %p83 = scmp.ne.s32.totalorder %s78, %s80
    %p84 = scmp.eq.s32.totalorder %s23, 0
    %p85 = por %p83, %p84
    %p86 = scmp.ne.s32.totalorder %s78, %s80
    %p87 = scmp.eq.s32.totalorder %s28, 1
    %p88 = por %p86, %p87
    %p89 = scmp.ne.s32.totalorder %s80, %s81
    %p90 = scmp.eq.s32.totalorder %s28, 0
    %p91 = por %p89, %p90
    %p92 = scmp.ne.s32.totalorder %s80, %s81
    %p93 = scmp.eq.s32.totalorder %s29, 1
    %p94 = por %p92, %p93
    %p96 = scmp.ne.s32.totalorder %s81, %s95
    %p97 = scmp.eq.s32.totalorder %s29, 0
    %p98 = por %p96, %p97
    %s100 = sadd.s32 %s99, 1
    %p103 = scmp.eq.s32.totalorder %s23, 1
    %p104 = scmp.ne.s32.totalorder %s99, %s101
    %p105 = scmp.eq.s32.totalorder %s23, 0
    %p106 = por %p104, %p105
    %p107 = scmp.ne.s32.totalorder %s99, %s101
    %p108 = scmp.eq.s32.totalorder %s28, 1
    %p109 = por %p107, %p108
    %p110 = scmp.ne.s32.totalorder %s101, %s102
    %p111 = scmp.eq.s32.totalorder %s28, 0
    %p112 = por %p110, %p111
    %p113 = scmp.ne.s32.totalorder %s101, %s102
    %p114 = scmp.eq.s32.totalorder %s29, 1
    %p115 = por %p113, %p114
    %p117 = scmp.ne.s32.totalorder %s102, %s116
    %p118 = scmp.eq.s32.totalorder %s29, 0
    %p119 = por %p117, %p118
    %s121 = sadd.s32 %s120, 1
    %p124 = scmp.eq.s32.totalorder %s23, 1
    %p125 = scmp.ne.s32.totalorder %s120, %s122
    %p126 = scmp.eq.s32.totalorder %s23, 0
    %p127 = por %p125, %p126
    %p128 = scmp.ne.s32.totalorder %s120, %s122
    %p129 = scmp.eq.s32.totalorder %s28, 1
    %p130 = por %p128, %p129
    %p131 = scmp.ne.s32.totalorder %s122, %s123
    %p132 = scmp.eq.s32.totalorder %s28, 0
    %p133 = por %p131, %p132
    %p134 = scmp.ne.s32.totalorder %s122, %s123
    %p135 = scmp.eq.s32.totalorder %s29, 1
    %p136 = por %p134, %p135
    %p138 = scmp.ne.s32.totalorder %s123, %s137
    %p139 = scmp.eq.s32.totalorder %s29, 0
    %p140 = por %p138, %p139
    %s142 = sadd.s32 %s141, 1
    %p145 = scmp.eq.s32.totalorder %s23, 1
    %p146 = scmp.ne.s32.totalorder %s141, %s143
    %p147 = scmp.eq.s32.totalorder %s23, 0
    %p148 = por %p146, %p147
    %p149 = scmp.ne.s32.totalorder %s141, %s143
    %p150 = scmp.eq.s32.totalorder %s28, 1
    %p151 = por %p149, %p150
    %p152 = scmp.ne.s32.totalorder %s143, %s144
    %p153 = scmp.eq.s32.totalorder %s28, 0
    %p154 = por %p152, %p153
    %p155 = scmp.ne.s32.totalorder %s143, %s144
    %p156 = scmp.eq.s32.totalorder %s29, 1
    %p157 = por %p155, %p156
    %p159 = scmp.ne.s32.totalorder %s144, %s158
    %p160 = scmp.eq.s32.totalorder %s29, 0
    %p161 = por %p159, %p160
    %s162 = ssub.s32 %s23, %s30
    %p163 = scmp.eq.s32.totalorder %s162, 0
    %s165 = sadd.s32 %s164, 1
    %s166 = scalar_select %p163, %s164, %s165
    %p169 = pneg %p163
    %p170 = scmp.eq.s32.totalorder %s23, 1
    %p171 = por %p169, %p170
    %p172 = scmp.ne.s32.totalorder %s164, %s167
    %p173 = scmp.eq.s32.totalorder %s23, 0
    %p174 = por %p172, %p173
    %p175 = scmp.ne.s32.totalorder %s164, %s167
    %p176 = scmp.eq.s32.totalorder %s28, 1
    %p177 = por %p175, %p176
    %p178 = scmp.ne.s32.totalorder %s167, %s168
    %p179 = scmp.eq.s32.totalorder %s28, 0
    %p180 = por %p178, %p179
    %p181 = scmp.ne.s32.totalorder %s167, %s168
    %p182 = scmp.eq.s32.totalorder %s29, 1
    %p183 = por %p181, %p182
    %p185 = scmp.ne.s32.totalorder %s168, %s184
    %p186 = scmp.eq.s32.totalorder %s29, 0
    %p187 = por %p185, %p186
    %s188 = ssub.s32 %s23, %s30
    %p189 = scmp.eq.s32.totalorder %s188, 0
    %s191 = sadd.s32 %s190, 1
    %s192 = scalar_select %p189, %s190, %s191
    %p195 = pneg %p189
    %p196 = scmp.eq.s32.totalorder %s23, 1
    %p197 = por %p195, %p196
    %p198 = scmp.ne.s32.totalorder %s190, %s193
    %p199 = scmp.eq.s32.totalorder %s23, 0
    %p200 = por %p198, %p199
    %p201 = scmp.ne.s32.totalorder %s190, %s193
    %p202 = scmp.eq.s32.totalorder %s28, 1
    %p203 = por %p201, %p202
    %p204 = scmp.ne.s32.totalorder %s193, %s194
    %p205 = scmp.eq.s32.totalorder %s28, 0
    %p206 = por %p204, %p205
    %p207 = scmp.ne.s32.totalorder %s193, %s194
    %p208 = scmp.eq.s32.totalorder %s29, 1
    %p209 = por %p207, %p208
    %p211 = scmp.ne.s32.totalorder %s194, %s210
    %p212 = scmp.eq.s32.totalorder %s29, 0
    %p213 = por %p211, %p212
    %p214 = scmp.le.s32.totalorder 1, %s23
    %p215 = scmp.lt.s32.totalorder %s23, 3
    %p216 = pnand %p214, %p215
    %p217 = pneg %p216
    // Predicated region
    $region9: #{rpn_forward.1} parent=5 // pred_check
      _
    $region10: #{rpn_forward.1} parent=5 // pred_check_branch
      %219 = sbr.rel (%p216) target = $region12
    $region11: #{rpn_forward.1} parent=5 // pred_region
      %s220 = ssub.s32 %s23, 1
      // Predicated region
      $region13: #{rpn_forward.1} parent=11 // pred_check
        %p221 = pneg %p70
      $region14: #{rpn_forward.1} parent=11 // pred_check_branch
        %223 = sbr.rel (%p221) target = $region16
      $region15: #{rpn_forward.1} parent=11 // pred_region
        _
      $region16: #{rpn_forward.1} parent=11 // pred_fallthru
        _
      // Predicated region
      $region17: #{rpn_forward.1} parent=11 // pred_check
        %p224 = pneg %p91
      $region18: #{rpn_forward.1} parent=11 // pred_check_branch
        %226 = sbr.rel (%p224) target = $region20
      $region19: #{rpn_forward.1} parent=11 // pred_region
        _
      $region20: #{rpn_forward.1} parent=11 // pred_fallthru
        _
      // Predicated region
      $region21: #{rpn_forward.1} parent=11 // pred_check
        %p227 = pneg %p112
      $region22: #{rpn_forward.1} parent=11 // pred_check_branch
        %229 = sbr.rel (%p227) target = $region24
      $region23: #{rpn_forward.1} parent=11 // pred_region
        _
      $region24: #{rpn_forward.1} parent=11 // pred_fallthru
        _
      // Predicated region
      $region25: #{rpn_forward.1} parent=11 // pred_check
        %p230 = pneg %p133
      $region26: #{rpn_forward.1} parent=11 // pred_check_branch
        %232 = sbr.rel (%p230) target = $region28
      $region27: #{rpn_forward.1} parent=11 // pred_region
        _
      $region28: #{rpn_forward.1} parent=11 // pred_fallthru
        _
      // Predicated region
      $region29: #{rpn_forward.1} parent=11 // pred_check
        %p233 = pneg %p154
      $region30: #{rpn_forward.1} parent=11 // pred_check_branch
        %235 = sbr.rel (%p233) target = $region32
      $region31: #{rpn_forward.1} parent=11 // pred_region
        _
      $region32: #{rpn_forward.1} parent=11 // pred_fallthru
        _
    $region12: #{rpn_forward.1} parent=5 // pred_fallthru
      _
    %p236 = scmp.lt.s32.totalorder %s23, 2
    // Predicated region
    $region33: #{rpn_forward.1} parent=5 // pred_check
      %p237 = pneg %p236
    $region34: #{rpn_forward.1} parent=5 // pred_check_branch
      %239 = sbr.rel (%p237) target = $region36
    $region35: #{rpn_forward.1} parent=5 // pred_region
      // Predicated region
      $region37: #{rpn_forward.1} parent=35 // pred_check
        %p240 = pneg %p43
      $region38: #{rpn_forward.1} parent=35 // pred_check_branch
        %242 = sbr.rel (%p240) target = $region40
      $region39: #{rpn_forward.1} parent=35 // pred_region
        %p243 = scmp.lt.s32.totalorder %s23, 1
        %s244 = scalar_select %p243, %s23, 1
        %s245 = smul.addr %s244, 36
        %s246 = smul.addr %s245, 4
        %s247 = scalar_lea.vmem %s1, %s246
      $region40: #{rpn_forward.1} parent=35 // pred_fallthru
        _
    $region36: #{rpn_forward.1} parent=5 // pred_fallthru
      _
    %p248 = scmp.le.s32.totalorder 1, %s23
    %p249 = scmp.lt.s32.totalorder %s23, 3
    %p250 = pnand %p248, %p249
    %p251 = pneg %p250
    // Predicated region
    $region41: #{rpn_forward.1} parent=5 // pred_check
      _
    $region42: #{rpn_forward.1} parent=5 // pred_check_branch
      %253 = sbr.rel (%p250) target = $region44
    $region43: #{rpn_forward.1} parent=5 // pred_region
      %s254 = ssub.s32 %s23, 1
      %p255 = scmp.lt.s32.totalorder %s28, 1
      %s256 = scalar_select %p255, %s28, 1
      %s257 = smul.addr %s256, 36
      %s258 = smul.addr %s257, 4
      %s259 = scalar_lea.vmem %s1, %s258
      %p260 = pneg %p49
      %p261 = pneg %p46
      %p262 = pneg %p70
      %p263 = pneg %p67
      %p264 = pneg %p91
      %p265 = pneg %p88
      %p266 = pneg %p112
      %p267 = pneg %p109
      %p268 = pneg %p133
      %p269 = pneg %p130
      %p270 = pneg %p154
      %p271 = pneg %p151
      %p272 = pneg %p180
      %p273 = pneg %p177
      %p274 = scmp.lt.s32.totalorder %s28, 1
      %s275 = scalar_select %p274, %s28, 1
      %s276 = smul.addr %s275, 2
      %s277 = smul.addr %s276, 4
      %s278 = scalar_lea.vmem %s7, %s277
      %p279 = pneg %p206
      %p280 = pneg %p203
      %p281 = scmp.lt.s32.totalorder %s28, 1
      %s282 = scalar_select %p281, %s28, 1
      %s283 = smul.addr %s282, 8
      %s284 = smul.addr %s283, 4
      %s285 = scalar_lea.vmem %s8, %s284
      %p286 = scmp.lt.s32.totalorder %s28, 1
      %s287 = scalar_select %p286, %s28, 1
      %s288 = smul.addr %s287, 36
      %s289 = smul.addr %s288, 4
      %s290 = scalar_lea.vmem %s1, %s289
      %p291 = scmp.lt.s32.totalorder %s28, 1
      %s292 = scalar_select %p291, %s28, 1
      %s293 = smul.addr %s292, 2
      %s294 = smul.addr %s293, 4
      %s295 = scalar_lea.vmem %s7, %s294
      %p296 = scmp.lt.s32.totalorder %s28, 1
      %s297 = scalar_select %p296, %s28, 1
      %s298 = smul.addr %s297, 8
      %s299 = smul.addr %s298, 4
      %s300 = scalar_lea.vmem %s8, %s299
      %v302 = vld [vmem:[%s290] sm:$0xff]
      %v303 = vld [vmem:[%s290 + $0x8] sm:$0xff]
      %v304 = vld [vmem:[%s290 + $0x10] sm:$0xff]
      %v305 = vld [vmem:[%s290 + $0x18] sm:$0xff]
      %v306 = vld [vmem:[%s290 + $0x20] sm:$0xff]
      %v307 = vld [vmem:[%s290 + $0x28] sm:$0xff]
      %v308 = vld [vmem:[%s290 + $0x30] sm:$0xff]
      %v309 = vld [vmem:[%s290 + $0x38] sm:$0xff]
      %v310 = vld [vmem:[%s290 + $0x40] sm:$0xff]
      %v311 = vld [vmem:[%s290 + $0x48] sm:$0xff]
      %v312 = vld [vmem:[%s290 + $0x50] sm:$0xff]
      %v313 = vld [vmem:[%s290 + $0x58] sm:$0xff]
      %v314 = vld [vmem:[%s290 + $0x60] sm:$0xff]
      %v315 = vld [vmem:[%s290 + $0x68] sm:$0xff]
      %v316 = vld [vmem:[%s290 + $0x70] sm:$0xff]
      %v317 = vld [vmem:[%s290 + $0x78] sm:$0xff]
      %v318 = vld [vmem:[%s290 + $0x80] sm:$0xff]
      %v319 = vld [vmem:[%s290 + $0x88] sm:$0xff]
      %v320 = vld [vmem:[%s2] sm:$0xff]
      %v321 = vld [vmem:[%s2 + $0x8] sm:$0xff]
      %v322 = vld [vmem:[%s3] sm:$0xff]
      %v323 = vld [vmem:[%s3 + $0x8] sm:$0xff]
      %325 = vset.pattern.permute.xlu0 0
      %326 = vperm.xlu0 %325, %v322
      %v327 = vpop.permute.xlu0 %326
      %330 = vset.pattern.permute.xlu0 0
      %331 = vperm.xlu0 %330, %v323
      %v332 = vpop.permute.xlu0 %331
      %v336 = vunpack.c.l.b16 %v320
      %v337 = vunpack.c.h.b16 %v320
      %v338 = vunpack.c.l.b16 %v321
      %v339 = vunpack.c.h.b16 %v321
      %v340 = vpack.c.b16 %v338, %v336
      %v341 = vpack.c.b16 %v339, %v337
      %v361 = vunpack.c.l.b16 %v302
      %v362 = vunpack.c.h.b16 %v302
      %v363 = vunpack.c.l.b16 %v303
      %v364 = vunpack.c.h.b16 %v303
      %v365 = vunpack.c.l.b16 %v304
      %v366 = vunpack.c.h.b16 %v304
      %v367 = vunpack.c.l.b16 %v305
      %v368 = vunpack.c.h.b16 %v305
      %v369 = vunpack.c.l.b16 %v306
      %v370 = vunpack.c.h.b16 %v306
      %v371 = vunpack.c.l.b16 %v307
      %v372 = vunpack.c.h.b16 %v307
      %v373 = vunpack.c.l.b16 %v308
      %v374 = vunpack.c.h.b16 %v308
      %v375 = vunpack.c.l.b16 %v309
      %v376 = vunpack.c.h.b16 %v309
      %v377 = vunpack.c.l.b16 %v310
      %v378 = vunpack.c.h.b16 %v310
      %v379 = vunpack.c.l.b16 %v311
      %v380 = vunpack.c.h.b16 %v311
      %v381 = vunpack.c.l.b16 %v312
      %v382 = vunpack.c.h.b16 %v312
      %v383 = vunpack.c.l.b16 %v313
      %v384 = vunpack.c.h.b16 %v313
      %v385 = vunpack.c.l.b16 %v314
      %v386 = vunpack.c.h.b16 %v314
      %v387 = vunpack.c.l.b16 %v315
      %v388 = vunpack.c.h.b16 %v315
      %v389 = vunpack.c.l.b16 %v316
      %v390 = vunpack.c.h.b16 %v316
      %v391 = vunpack.c.l.b16 %v317
      %v392 = vunpack.c.h.b16 %v317
      %v393 = vunpack.c.l.b16 %v318
      %v394 = vunpack.c.h.b16 %v318
      %v395 = vunpack.c.l.b16 %v319
      %v396 = vunpack.c.h.b16 %v319
      %v397 = vpack.c.b16 %v363, %v361
      %v398 = vpack.c.b16 %v364, %v362
      %v399 = vpack.c.b16 %v367, %v365
      %v400 = vpack.c.b16 %v368, %v366
      %v401 = vpack.c.b16 %v371, %v369
      %v402 = vpack.c.b16 %v372, %v370
      %v403 = vpack.c.b16 %v375, %v373
      %v404 = vpack.c.b16 %v376, %v374
      %v405 = vpack.c.b16 %v379, %v377
      %v406 = vpack.c.b16 %v380, %v378
      %v407 = vpack.c.b16 %v383, %v381
      %v408 = vpack.c.b16 %v384, %v382
      %v409 = vpack.c.b16 %v387, %v385
      %v410 = vpack.c.b16 %v388, %v386
      %v411 = vpack.c.b16 %v391, %v389
      %v412 = vpack.c.b16 %v392, %v390
      %v413 = vpack.c.b16 %v395, %v393
      %v414 = vpack.c.b16 %v396, %v394
      %vm433 = vcmask 130048
      %v435 = vsel %vm433, %v341, 0
      %437 = vmatpush.bf16.msra.mxu0 %v411
      %438 = vmatpush.bf16.msra.mxu0 %v409
      %439 = vmatpush.bf16.msra.mxu0 %v407
      %440 = vmatpush.bf16.msra.mxu0 %v405
      %441 = vmatpush.bf16.msra.mxu0 %v403
      %442 = vmatpush.bf16.msra.mxu0 %v401
      %443 = vmatpush.bf16.msra.mxu0 %v399
      %444 = vmatpush.bf16.msra.mxu0 %v397
      %445 = vmatmul.bf16.gmra.mxu0 %v340
      %v446 = vpop.f32.mrf.mxu0
      %v447 = vadd.f32 %v327, %v446
      %v448 = vpop.f32.mrf.mxu0
      %v449 = vadd.f32 %v332, %v448
      %450 = vdwg.mxu0
      %451 = vmatpush.bf16.msra.mxu0 0
      %452 = vmatpush.bf16.msra.mxu0 0
      %453 = vmatpush.bf16.msra.mxu0 0
      %454 = vmatpush.bf16.msra.mxu0 0
      %455 = vmatpush.bf16.msra.mxu0 0
      %456 = vmatpush.bf16.msra.mxu0 0
      %457 = vmatpush.bf16.msra.mxu0 0
      %458 = vmatpush.bf16.msra.mxu0 %v413
      %459 = vmatmul.bf16.gmra.mxu0 %v435
      %v460 = vpop.f32.mrf.mxu0
      %v461 = vadd.f32 %v447, %v460
      %v462 = vpop.f32.mrf.mxu0
      %v463 = vadd.f32 %v449, %v462
      %464 = vdwg.mxu0
      %465 = vmatpush.bf16.msra.mxu0 %v412
      %466 = vmatpush.bf16.msra.mxu0 %v410
      %467 = vmatpush.bf16.msra.mxu0 %v408
      %468 = vmatpush.bf16.msra.mxu0 %v406
      %469 = vmatpush.bf16.msra.mxu0 %v404
      %470 = vmatpush.bf16.msra.mxu0 %v402
      %471 = vmatpush.bf16.msra.mxu0 %v400
      %472 = vmatpush.bf16.msra.mxu0 %v398
      %473 = vmatmul.bf16.gmra.mxu0 %v340
      %v474 = vpop.f32.mrf.mxu0
      %v475 = vadd.f32 %v327, %v474
      %v476 = vpop.f32.mrf.mxu0
      %v477 = vadd.f32 %v332, %v476
      %478 = vdwg.mxu0
      %479 = vmatpush.bf16.msra.mxu0 0
      %480 = vmatpush.bf16.msra.mxu0 0
      %481 = vmatpush.bf16.msra.mxu0 0
      %482 = vmatpush.bf16.msra.mxu0 0
      %483 = vmatpush.bf16.msra.mxu0 0
      %484 = vmatpush.bf16.msra.mxu0 0
      %485 = vmatpush.bf16.msra.mxu0 0
      %486 = vmatpush.bf16.msra.mxu0 %v414
      %487 = vmatmul.bf16.gmra.mxu0 %v435
      %v488 = vpop.f32.mrf.mxu0
      %v489 = vadd.f32 %v475, %v488
      %v490 = vpop.f32.mrf.mxu0
      %v491 = vadd.f32 %v477, %v490
      %492 = vdwg.mxu0
      %v493 = vmax.f32 %v461, 0.0
      %v494 = vmax.f32 %v489, 0.0
      %v495 = vmax.f32 %v463, 0.0
      %v496 = vmax.f32 %v491, 0.0
      %v497 = vld [vmem:[%s4] sm:$0xf]
      %v498 = vld [vmem:[%s4 + $0x4] sm:$0xf]
      %v499 = vpack.c.bf16 %v495, %v493
      %v500 = vpack.c.bf16 %v496, %v494
      %v501 = vld [vmem:[%s5] sm:$0xff]
      %v502 = vld [vmem:[%s5 + $0x8] sm:$0x7f]
      %504 = vset.pattern.permute.xlu0 0
      %505 = vperm.xlu0 %504, %v501
      %v506 = vpop.permute.xlu0 %505
      %509 = vset.pattern.permute.xlu0 0
      %510 = vperm.xlu0 %509, %v502
      %v511 = vpop.permute.xlu0 %510
      %v515 = vunpack.c.l.b16 %v497
      %v516 = vunpack.c.l.b16 %v498
      %v517 = vpack.c.b16 %v516, %v515
      %v519 = vsel %vm433, %v517, 0
      %521 = vmatpush.bf16.msra.mxu0 0
      %522 = vmatpush.bf16.msra.mxu0 0
      %523 = vmatpush.bf16.msra.mxu0 0
      %524 = vmatpush.bf16.msra.mxu0 0
      %525 = vmatpush.bf16.msra.mxu0 0
      %526 = vmatpush.bf16.msra.mxu0 0
      %527 = vmatpush.bf16.msra.mxu0 0
      %528 = vmatpush.bf16.msra.mxu0 %v499
      %529 = vmatmul.bf16.gmra.mxu0 %v519
      %v530 = vpop.f32.mrf.mxu0
      %v531 = vadd.f32 %v506, %v530
      %v532 = vpop.f32.mrf.mxu0
      %v533 = vadd.f32 %v511, %v532
      %534 = vdwg.mxu0
      %535 = vmatpush.bf16.msra.mxu0 0
      %536 = vmatpush.bf16.msra.mxu0 0
      %537 = vmatpush.bf16.msra.mxu0 0
      %538 = vmatpush.bf16.msra.mxu0 0
      %539 = vmatpush.bf16.msra.mxu0 0
      %540 = vmatpush.bf16.msra.mxu0 0
      %541 = vmatpush.bf16.msra.mxu0 0
      %542 = vmatpush.bf16.msra.mxu0 %v500
      %543 = vmatmul.bf16.gmra.mxu0 %v519
      %v544 = vpop.f32.mrf.mxu0
      %v545 = vadd.f32 %v506, %v544
      %v546 = vpop.f32.mrf.mxu0
      %v547 = vadd.f32 %v511, %v546
      %548 = vdwg.mxu0
      %v551 = vrot.slane %v545, 4
      %vm552 = vcmask 1043456
      %v553 = vsel %vm552, %v531, %v551
      %555 = vst [vmem:[%s295] sm:$0x77] %v553
      %v556 = vmin.f32 %v533, 4.1351666
      %v557 = vmin.f32 %v547, 4.1351666
      %v558 = vld [vmem:[%s6] sm:$0x77]
      %s559 = scalar_lea.vmem %s6, 8
      %v560 = vld [vmem:[%s559] sm:$0x77]
      %s561 = scalar_lea.vmem %s6, 16
      %v562 = vld [vmem:[%s561] sm:$0x77]
      %s563 = scalar_lea.vmem %s6, 24
      %v564 = vld [vmem:[%s563] sm:$0x77]
      %566 = vst [vmem:[#allocation1] ss:$2 sm:$0xff] %v558
      %v567 = vld.sshfl [vmem:[#allocation1] sm:$0xff pattern:$0x75316420]
      %v568 = vld.sshfl [vmem:[#allocation1 + $0x8] sm:$0xff pattern:$0x75316420]
      %v569 = vrot.slane %v567, 5
      %v570 = vrot.slane %v568, 5
      %v573 = vmul.f32 %v531, %v569
      %v574 = vmul.f32 %v545, %v570
      %576 = vst [vmem:[#allocation1] ss:$2 sm:$0xff] %v562
      %v577 = vld.sshfl [vmem:[#allocation1] sm:$0xff pattern:$0x75316420]
      %v578 = vld.sshfl [vmem:[#allocation1 + $0x8] sm:$0xff pattern:$0x75316420]
      %v579 = vrot.slane %v577, 5
      %v580 = vrot.slane %v578, 5
      %v583 = vadd.f32 %v573, %v579
      %v584 = vadd.f32 %v574, %v580
      %586 = vst [vmem:[#allocation1] ss:$2 sm:$0xff] %v560
      %v587 = vld.sshfl [vmem:[#allocation1] sm:$0xff pattern:$0x75316420]
      %v588 = vld.sshfl [vmem:[#allocation1 + $0x8] sm:$0xff pattern:$0x75316420]
      %v589 = vrot.slane %v587, 2
      %v590 = vrot.slane %v588, 2
      %v593 = vmul.f32 %v531, %v589
      %v594 = vmul.f32 %v545, %v590
      %v595 = vmul.f32 %v533, %v589
      %v596 = vmul.f32 %v547, %v590
      %598 = vst [vmem:[#allocation1] ss:$2 sm:$0xff] %v564
      %v599 = vld.sshfl [vmem:[#allocation1] sm:$0xff pattern:$0x75316420]
      %v600 = vld.sshfl [vmem:[#allocation1 + $0x8] sm:$0xff pattern:$0x75316420]
      %v601 = vrot.slane %v599, 2
      %v602 = vrot.slane %v600, 2
      %v605 = vadd.f32 %v593, %v601
      %v606 = vadd.f32 %v594, %v602
      %v607 = vadd.f32 %v595, %v601
      %v608 = vadd.f32 %v596, %v602
      %v609 = vmul.f32 %v556, 1.442695
      %v610 = vpow.pop %v609
      %v611 = vmul.f32 %v557, 1.442695
      %v612 = vpow.pop %v611
      %613 = vst [vmem:[#allocation1] ss:$2 sm:$0xff] %v558
      %v614 = vld.sshfl [vmem:[#allocation1] sm:$0xff pattern:$0x75316420]
      %v615 = vld.sshfl [vmem:[#allocation1 + $0x8] sm:$0xff pattern:$0x75316420]
      %v616 = vrot.slane %v614, 7
      %v617 = vrot.slane %v615, 7
      %v620 = vmul.f32 %v610, %v616
      %v621 = vmul.f32 %v612, %v617
      %s622 = scalar_lea.vmem [#allocation1], 1
      %623 = vst [vmem:[%s622] ss:$2 sm:$0xff] %v560
      %v624 = vld.sshfl [vmem:[#allocation1] sm:$0xff pattern:$0x75316420]
      %v625 = vld.sshfl [vmem:[#allocation1 + $0x8] sm:$0xff pattern:$0x75316420]
      %v628 = vmul.f32 %v610, %v624
      %v629 = vmul.f32 %v612, %v625
      %s630 = smul.u32 %s28, 128
      %s631 = sld [smem:[#allocation3 + %s630]]
      %s632 = scvt.s32.f32 %s631
      %s633 = sadd.s32 %s630, 1
      %s634 = sld [smem:[#allocation3 + %s633]]
      %s635 = scvt.s32.f32 %s634
      %v636 = vmul.f32 %v620, 0.5
      %v637 = vmul.f32 %v621, 0.5
      %v640 = vrot.slane %v636, 6
      %v641 = vrot.slane %v637, 6
      %v644 = vsub.f32 %v583, %v640
      %v645 = vsub.f32 %v584, %v641
      %v646 = vmax.f32 %v644, 0.0
      %v647 = vmax.f32 %v645, 0.0
      %v648 = vstv %s635
      %v649 = vmin.f32 %v648, %v646
      %v650 = vmin.f32 %v648, %v647
      %v653 = vrot.slane %v650, 4
      %v654 = vsel %vm552, %v649, %v653
      %v655 = vsel %vm552, %v653, %v649
      %v656 = vrot.slane %v655, 4
      %vm657 = vcmask 1040384
      %vm658 = vcmask 1044484
      %vm659 = vmor %vm657, %vm658
      %v660 = vrot.slane %v654, 7
      %v661 = vrot.slane %v660, 4
      %v662 = vrot.slane %v656, 7
      %v663 = vsel %vm659, %v661, %v662
      %665 = vst [vmem:[%s300] sm:$0x77] %v663
      %v666 = vmul.f32 %v628, 0.5
      %v667 = vmul.f32 %v629, 0.5
      %v670 = vrot.slane %v666, 6
      %v671 = vrot.slane %v667, 6
      %v674 = vsub.f32 %v605, %v670
      %v675 = vsub.f32 %v606, %v671
      %v676 = vsub.f32 %v607, %v670
      %v677 = vsub.f32 %v608, %v671
      %v678 = vmax.f32 %v674, 0.0
      %v679 = vmax.f32 %v675, 0.0
      %v680 = vmax.f32 %v676, 0.0
      %v681 = vmax.f32 %v677, 0.0
      %v682 = vstv %s632
      %v683 = vmin.f32 %v682, %v678
      %v684 = vmin.f32 %v682, %v679
      %v685 = vmin.f32 %v682, %v680
      %v686 = vmin.f32 %v682, %v681
      %691 = vst.sshfl [vmem:[#allocation1] sm:$0xff pattern:$0x75316420] %v683
      %692 = vst.sshfl [vmem:[#allocation1 + $0x8] sm:$0xff pattern:$0x75316420] %v684
      %693 = vst.sshfl [vmem:[#allocation1 + $0x10] sm:$0xff pattern:$0x75316420] %v685
      %694 = vst.sshfl [vmem:[#allocation1 + $0x18] sm:$0xff pattern:$0x75316420] %v686
      %s695 = scalar_lea.vmem [#allocation1], 1
      %v696 = vld [vmem:[%s695] ss:$2 sm:$0xff]
      %s697 = scalar_lea.vmem [#allocation1], 16
      %v698 = vld [vmem:[%s697] ss:$2 sm:$0xff]
      %vm699 = vcmask 1041408
      %vm700 = vcmask 1045508
      %vm701 = vmor %vm699, %vm700
      %v702 = vrot.slane %v696, 6
      %v703 = vrot.slane %v702, 4
      %v704 = vrot.slane %v698, 6
      %v705 = vsel %vm701, %v703, %v704
      %s707 = scalar_lea.vmem %s300, 8
      %708 = vst [vmem:[%s707] sm:$0x77] %v705
      %v709 = vadd.f32 %v583, %v640
      %v710 = vadd.f32 %v584, %v641
      %v711 = vmax.f32 %v709, 0.0
      %v712 = vmax.f32 %v710, 0.0
      %v713 = vmin.f32 %v648, %v711
      %v714 = vmin.f32 %v648, %v712
      %v717 = vrot.slane %v714, 4
      %v718 = vsel %vm552, %v713, %v717
      %v719 = vsel %vm552, %v717, %v713
      %v720 = vrot.slane %v719, 4
      %v721 = vrot.slane %v718, 7
      %v722 = vrot.slane %v721, 4
      %v723 = vrot.slane %v720, 7
      %v724 = vsel %vm659, %v722, %v723
      %s726 = scalar_lea.vmem %s300, 16
      %727 = vst [vmem:[%s726] sm:$0x77] %v724
      %v728 = vadd.f32 %v605, %v670
      %v729 = vadd.f32 %v606, %v671
      %v730 = vadd.f32 %v607, %v670
      %v731 = vadd.f32 %v608, %v671
      %v732 = vmax.f32 %v728, 0.0
      %v733 = vmax.f32 %v729, 0.0
      %v734 = vmax.f32 %v730, 0.0
      %v735 = vmax.f32 %v731, 0.0
      %v736 = vmin.f32 %v682, %v732
      %v737 = vmin.f32 %v682, %v733
      %v738 = vmin.f32 %v682, %v734
      %v739 = vmin.f32 %v682, %v735
      %744 = vst.sshfl [vmem:[#allocation1] sm:$0xff pattern:$0x75316420] %v736
      %745 = vst.sshfl [vmem:[#allocation1 + $0x8] sm:$0xff pattern:$0x75316420] %v737
      %746 = vst.sshfl [vmem:[#allocation1 + $0x10] sm:$0xff pattern:$0x75316420] %v738
      %747 = vst.sshfl [vmem:[#allocation1 + $0x18] sm:$0xff pattern:$0x75316420] %v739
      %s748 = scalar_lea.vmem [#allocation1], 1
      %v749 = vld [vmem:[%s748] ss:$2 sm:$0xff]
      %s750 = scalar_lea.vmem [#allocation1], 16
      %v751 = vld [vmem:[%s750] ss:$2 sm:$0xff]
      %v752 = vrot.slane %v749, 6
      %v753 = vrot.slane %v752, 4
      %v754 = vrot.slane %v751, 6
      %v755 = vsel %vm701, %v753, %v754
      %s757 = scalar_lea.vmem %s300, 24
      %758 = vst [vmem:[%s757] sm:$0x77] %v755
      %p759 = scmp.lt.s32.totalorder %s28, 1
      %s760 = scalar_select %p759, %s28, 1
      %s761 = smul.addr %s760, 2
      %s762 = smul.addr %s761, 4
      %s763 = scalar_lea.vmem %s7, %s762
      %p764 = scmp.lt.s32.totalorder %s28, 1
      %s765 = scalar_select %p764, %s28, 1
      %s766 = smul.addr %s765, 8
      %s767 = smul.addr %s766, 4
      %s768 = scalar_lea.vmem %s8, %s767
      // Predicated region
      $region45: #{rpn_forward.1} parent=43 // pred_check
        %p769 = pneg %p177
      $region46: #{rpn_forward.1} parent=43 // pred_check_branch
        %771 = sbr.rel (%p769) target = $region48
      $region47: #{rpn_forward.1} parent=43 // pred_region
        _
      $region48: #{rpn_forward.1} parent=43 // pred_fallthru
        _
      // Predicated region
      $region49: #{rpn_forward.1} parent=43 // pred_check
        %p772 = pneg %p203
      $region50: #{rpn_forward.1} parent=43 // pred_check_branch
        %774 = sbr.rel (%p772) target = $region52
      $region51: #{rpn_forward.1} parent=43 // pred_region
        _
      $region52: #{rpn_forward.1} parent=43 // pred_fallthru
        _
    $region44: #{rpn_forward.1} parent=5 // pred_fallthru
      _
    %p775 = scmp.le.s32.totalorder 2, %s23
    // Predicated region
    $region53: #{rpn_forward.1} parent=5 // pred_check
      %p776 = pneg %p775
    $region54: #{rpn_forward.1} parent=5 // pred_check_branch
      %778 = sbr.rel (%p776) target = $region56
    $region55: #{rpn_forward.1} parent=5 // pred_region
      %s779 = ssub.s32 %s23, 2
      // Predicated region
      $region57: #{rpn_forward.1} parent=55 // pred_check
        %p780 = pneg %p183
      $region58: #{rpn_forward.1} parent=55 // pred_check_branch
        %782 = sbr.rel (%p780) target = $region60
      $region59: #{rpn_forward.1} parent=55 // pred_region
        %p783 = scmp.lt.s32.totalorder %s29, 1
        %s784 = scalar_select %p783, %s29, 1
        %s785 = smul.addr %s784, 2
        %s786 = smul.addr %s785, 4
        %s787 = scalar_lea.vmem %s7, %s786
      $region60: #{rpn_forward.1} parent=55 // pred_fallthru
        _
      // Predicated region
      $region61: #{rpn_forward.1} parent=55 // pred_check
        %p788 = pneg %p209
      $region62: #{rpn_forward.1} parent=55 // pred_check_branch
        %790 = sbr.rel (%p788) target = $region64
      $region63: #{rpn_forward.1} parent=55 // pred_region
        %p791 = scmp.lt.s32.totalorder %s29, 1
        %s792 = scalar_select %p791, %s29, 1
        %s793 = smul.addr %s792, 8
        %s794 = smul.addr %s793, 4
        %s795 = scalar_lea.vmem %s8, %s794
      $region64: #{rpn_forward.1} parent=55 // pred_fallthru
        _
    $region56: #{rpn_forward.1} parent=5 // pred_fallthru
      _
  $region6: #{rpn_forward.1} parent=0 // loop_footer
    %s27 = sadd.s32 1, %s23
  $region7: #{rpn_forward.1} parent=0 // loop_footer_branch
    %22 = sbr.rel target = $region3
  $region8: #{rpn_forward.1} parent=0 // loop_exit
    _

</llo_original>
